<compile_context>
chip_gen: v5e
topology: v5e:2x2
jax: 0.10.0
libtpu: 0.0.40
codegen_flags: <defaults>
</compile_context>

<pallas_src>
import jax
import jax.numpy as jnp
from jax.experimental import pallas as pl
from jax.experimental.pallas import tpu as pltpu


_LANE = 128


def _round_up(x, m):
    return ((x + m - 1) // m) * m


# ---------------------------------------------------------------------------
# Kernel
# ---------------------------------------------------------------------------
def _make_mlp_kernel(n_parts):
    """Fused 2-layer MLP over one batch tile, with `n_parts` feature blocks."""

    def kernel(*refs):
        x_refs = refs[:n_parts]                       # each (TB, D_i)  f32/bf16
        w_refs = refs[n_parts:2 * n_parts]            # each (D_i, H)   bf16
        b1_ref, w2_ref, b2_ref, o_ref = refs[2 * n_parts:]

        # hidden = relu( sum_i x_i @ W1_i + b1 )  -- MXU bf16 x bf16, f32 acc.
        # The f32 -> bf16 cast happens here (VPU), not as a separate XLA pass.
        acc = None
        for xr, wr in zip(x_refs, w_refs):
            p = jnp.dot(xr[...].astype(jnp.bfloat16), wr[...],
                        preferred_element_type=jnp.float32)
            acc = p if acc is None else acc + p
        h = jnp.maximum(acc + b1_ref[...], 0.0)       # (TB, H) f32

        # Second layer, lane-dense: (1, H) x (TB, H) -> (1, TB) on the MXU
        # (same contraction pattern as flash attention's 'bqd,bkd->bqk'), so
        # the output store is a contiguous, unmasked 128-lane-multiple row.
        o = jnp.einsum("oh,th->ot", w2_ref[...], h.astype(jnp.bfloat16),
                       preferred_element_type=jnp.float32)
        o_ref[...] = o + b2_ref[0, 0]

    return kernel


# ---------------------------------------------------------------------------
# Tiling (generation-aware)
# ---------------------------------------------------------------------------
def _vmem_capacity_bytes():
    try:
        cap = int(getattr(pltpu.get_tpu_info(), "vmem_capacity_bytes"))
        if cap > 0:
            return cap
    except Exception:
        pass
    return 64 * 1024 * 1024            # conservative fallback (v7x per-TC)


def _choose_tiling(B, part_dims, H):
    """Pick (batch_tile, vmem_limit_bytes) from the chip's VMEM capacity."""
    cap = _vmem_capacity_bytes()
    vmem_limit = min((cap * 3) // 4, 100 * 1024 * 1024)  # 48 MiB v7x, 96 MiB v5e/v6e
    budget = vmem_limit // 2                             # headroom for Mosaic scratch

    pad = lambda d: _round_up(d, _LANE)
    D = sum(part_dims)
    # Per-batch-row VMEM bytes, counting lane padding of narrow (<128) blocks
    # and double buffering of the pipelined inputs / output.
    bytes_per_row = (
        2 * 4 * sum(pad(d) for d in part_dims)   # f32 input blocks, x2 buffers
        + 2 * sum(pad(d) for d in part_dims)     # in-kernel bf16 casts
        + 3 * 4 * pad(H)                         # f32 partial/acc/relu temps
        + 2 * pad(H)                             # bf16 h for the second matmul
        + 2 * 4                                  # (1, TB) f32 output, x2 buffers
    )
    weight_bytes = 2 * (D * pad(H) * 2 + pad(H) * 4 + pad(H) * 2)
    avail = max(budget - weight_bytes, 1 << 20)

    tb = avail // max(bytes_per_row, 1)
    tb = min(tb, 8192)                           # bound per-step latency
    if B >= 256:
        # >= 2 grid steps: shards the "parallel" axis across v7x's two
        # TensorCores and gives the DMA/compute pipeline more than one stage.
        tb = min(tb, _round_up(pl.cdiv(B, 2), _LANE))
    if tb >= B:
        return B, vmem_limit                     # single full-batch block
    tb = max(_LANE, (tb // _LANE) * _LANE)       # multiple of 128 (lane-dense out)
    return int(tb), vmem_limit


# ---------------------------------------------------------------------------
# pallas_call wrapper
# ---------------------------------------------------------------------------
def _fused_mlp(x_parts, w1_parts, b1, w2_row, b2):
    """x_parts: list of (B, D_i); w1_parts: list of (D_i, H) bf16;
    b1: (1, H) f32; w2_row: (1, H) bf16; b2: (1, 1) f32  ->  (B, 1) f32."""
    n_parts = len(x_parts)
    B = x_parts[0].shape[0]
    H = b1.shape[1]
    part_dims = [int(p.shape[1]) for p in x_parts]
    D = sum(part_dims)
    TB, vmem_limit = _choose_tiling(B, part_dims, H)
    G = pl.cdiv(B, TB)

    in_specs = []
    for p in x_parts:                                             # batch-tiled activations
        in_specs.append(pl.BlockSpec((TB, p.shape[1]), lambda i: (i, 0)))
    for w in w1_parts:                                            # weights: constant block
        in_specs.append(pl.BlockSpec(w.shape, lambda i: (0, 0)))  # -> fetched once
    in_specs.append(pl.BlockSpec(b1.shape, lambda i: (0, 0)))
    in_specs.append(pl.BlockSpec(w2_row.shape, lambda i: (0, 0)))
    in_specs.append(pl.BlockSpec(memory_space=pltpu.MemorySpace.SMEM))  # b2 scalar

    cost = pl.CostEstimate(
        flops=2 * B * D * H + 2 * B * H,
        transcendentals=0,
        bytes_accessed=B * D * 4 + B * 4 + D * H * 2 + H * 6 + 4)

    out = pl.pallas_call(
        _make_mlp_kernel(n_parts),
        out_shape=jax.ShapeDtypeStruct((1, G * TB), jnp.float32),
        grid=(G,),
        in_specs=in_specs,
        out_specs=pl.BlockSpec((1, TB), lambda i: (0, i)),
        compiler_params=pltpu.CompilerParams(
            dimension_semantics=("parallel",),
            vmem_limit_bytes=int(vmem_limit)),
        cost_estimate=cost,
    )(*x_parts, *w1_parts, b1, w2_row, b2)

    # Lane-dense (1, G*TB) result -> (B, 1); ragged-tile padding rows dropped.
    return out[0, :B].reshape(B, 1)


# ---------------------------------------------------------------------------
# Module
# ---------------------------------------------------------------------------
class ConditionalMutualInformationEstimator:
    """JAX/Pallas port of the PyTorch module (forward only)."""

    def __init__(self, input_dim_z, input_dim_x1, input_dim_x2x3, hidden_dim=128,
                 key=None):
        if key is None:
            key = jax.random.PRNGKey(0)
        D = input_dim_z + input_dim_x1 + input_dim_x2x3
        H = hidden_dim
        k1, k2, k3, k4 = jax.random.split(key, 4)
        # nn.Linear-style init: U(-1/sqrt(fan_in), 1/sqrt(fan_in)).
        lim1 = 1.0 / float(D) ** 0.5
        lim2 = 1.0 / float(H) ** 0.5
        # W1 stored transposed (D, H); W2 stored as its torch (1, H) row.
        self.w1 = jax.random.uniform(k1, (D, H), jnp.float32, -lim1, lim1)
        self.b1 = jax.random.uniform(k2, (1, H), jnp.float32, -lim1, lim1)
        self.w2_row = jax.random.uniform(k3, (1, H), jnp.float32, -lim2, lim2)
        self.b2 = jax.random.uniform(k4, (1, 1), jnp.float32, -lim2, lim2)
        # bf16 copies for the MXU, made once; W1 row-slices cached per widths
        # so repeated eager calls don't re-materialize slices in HBM.
        self.w1_bf16 = self.w1.astype(jnp.bfloat16)
        self.w2_bf16 = self.w2_row.astype(jnp.bfloat16)
        self._w1_split_cache = {}

    def _w1_slices(self, widths):
        k = tuple(widths)
        if k not in self._w1_split_cache:
            slices, off = [], 0
            for w in widths:
                slices.append(self.w1_bf16[off:off + w, :])
                off += w
            self._w1_split_cache[k] = slices
        return self._w1_split_cache[k]

    def __call__(self, z, x1, x2, x3):
        if x1 is not None and x2 is not None:
            parts = [z, x1, x2, x3]
        elif x1 is None and x2 is None:
            # Mirrors the PyTorch branch; shape-valid only if Dz + Dx3 == fan-in.
            parts = [z, x3]
        else:
            raise ValueError("Either provide both x1 and x2, or neither.")

        widths = [int(p.shape[1]) for p in parts]
        D = self.w1.shape[0]
        if sum(widths) != D:
            raise ValueError(
                f"feature width {sum(widths)} does not match Linear fan-in {D}")

        # Activations are passed at native dtype; bf16 cast happens in-kernel.
        return _fused_mlp(parts, self._w1_slices(widths), self.b1,
                          self.w2_bf16, self.b2)


# ---------------------------------------------------------------------------
# Pure-JAX reference (same bf16 rounding of the MXU operands, exact f32 math)
# ---------------------------------------------------------------------------
def _reference(model, parts):
    inp = jnp.concatenate(parts, axis=1).astype(jnp.bfloat16).astype(jnp.float32)
    w1 = model.w1_bf16.astype(jnp.float32)
    h = jnp.maximum(
        jnp.dot(inp, w1, precision=jax.lax.Precision.HIGHEST) + model.b1, 0.0)
    h = h.astype(jnp.bfloat16).astype(jnp.float32)
    w2 = model.w2_bf16.astype(jnp.float32)
    return jnp.dot(h, w2.T, precision=jax.lax.Precision.HIGHEST) + model.b2


if __name__ == "__main__":
    # Small deterministic example shapes (exercises the multi-tile grid path).
    B = 256
    Dz, Dx1, Dx2, Dx3 = 32, 32, 32, 32        # input_dim_x2x3 = Dx2 + Dx3 = 64
    hidden = 128

    key = jax.random.PRNGKey(0)
    kz, k1, k2, k3, kp = jax.random.split(key, 5)
    z  = jax.random.normal(kz, (B, Dz), jnp.float32)
    x1 = jax.random.normal(k1, (B, Dx1), jnp.float32)
    x2 = jax.random.normal(k2, (B, Dx2), jnp.float32)
    x3 = jax.random.normal(k3, (B, Dx3), jnp.float32)

    model = ConditionalMutualInformationEstimator(
        input_dim_z=Dz, input_dim_x1=Dx1, input_dim_x2x3=Dx2 + Dx3,
        hidden_dim=hidden, key=kp)

    out = jax.block_until_ready(model(z, x1, x2, x3))
    ref = _reference(model, [z, x1, x2, x3])

    assert out.shape == (B, 1), out.shape
    max_err = float(jnp.max(jnp.abs(out - ref)))
    assert jnp.allclose(out, ref, atol=5e-3, rtol=1e-2), (
        f"mismatch vs JAX reference: max abs err {max_err}")

    print("KERNEL_OK")
</pallas_src>

<mosaic_0001>
module attributes {stable_mosaic.version = 11 : i64} {
  func.func @kernel(%arg0: i32, %arg1: memref<128x32xf32, #tpu.memory_space<vmem>>, %arg2: memref<128x32xf32, #tpu.memory_space<vmem>>, %arg3: memref<128x32xf32, #tpu.memory_space<vmem>>, %arg4: memref<128x32xf32, #tpu.memory_space<vmem>>, %arg5: memref<32x128xbf16, #tpu.memory_space<vmem>>, %arg6: memref<32x128xbf16, #tpu.memory_space<vmem>>, %arg7: memref<32x128xbf16, #tpu.memory_space<vmem>>, %arg8: memref<32x128xbf16, #tpu.memory_space<vmem>>, %arg9: memref<1x128xf32, #tpu.memory_space<vmem>>, %arg10: memref<1x128xbf16, #tpu.memory_space<vmem>>, %arg11: memref<1x1xf32, #tpu.memory_space<smem>>, %arg12: memref<1x128xf32, #tpu.memory_space<vmem>>) attributes {dimension_semantics = [#tpu.dimension_semantics<parallel>], iteration_bounds = array<i64: 2>, scalar_prefetch = 0 : i64, scratch_operands = 0 : i64, tpu.core_type = #tpu.core_type<tc>, window_params = [{transform_indices = @transform_0, window_bounds = array<i64: 128, 32>}, {transform_indices = @transform_1, window_bounds = array<i64: 128, 32>}, {transform_indices = @transform_2, window_bounds = array<i64: 128, 32>}, {transform_indices = @transform_3, window_bounds = array<i64: 128, 32>}, {pipeline_mode = #tpu.pipeline_mode<synchronous>, transform_indices = @transform_4, window_bounds = array<i64: 32, 128>}, {pipeline_mode = #tpu.pipeline_mode<synchronous>, transform_indices = @transform_5, window_bounds = array<i64: 32, 128>}, {pipeline_mode = #tpu.pipeline_mode<synchronous>, transform_indices = @transform_6, window_bounds = array<i64: 32, 128>}, {pipeline_mode = #tpu.pipeline_mode<synchronous>, transform_indices = @transform_7, window_bounds = array<i64: 32, 128>}, {pipeline_mode = #tpu.pipeline_mode<synchronous>, transform_indices = @transform_8, window_bounds = array<i64: 1, 128>}, {pipeline_mode = #tpu.pipeline_mode<synchronous>, transform_indices = @transform_9, window_bounds = array<i64: 1, 128>}, {transform_indices = @transform_10, window_bounds = array<i64: 1, 1>}, {transform_indices = @transform_11, window_bounds = array<i64: 1, 128>}]} {
    %c0 = arith.constant 0 : index
    %c0_0 = arith.constant 0 : index
    %0 = vector.load %arg1[%c0, %c0_0] : memref<128x32xf32, #tpu.memory_space<vmem>>, vector<128x32xf32>
    %1 = arith.truncf %0 : vector<128x32xf32> to vector<128x32xbf16>
    %c0_1 = arith.constant 0 : index
    %c0_2 = arith.constant 0 : index
    %2 = vector.load %arg5[%c0_1, %c0_2] : memref<32x128xbf16, #tpu.memory_space<vmem>>, vector<32x128xbf16>
    %cst = arith.constant dense<0.000000e+00> : vector<128x128xf32>
    %3 = tpu.matmul %1, %2, %cst {dimension_numbers = #tpu.dot_dimension_numbers<[1], [0], [0], [1], [0, 0, 1, 1], [], []>} : vector<128x32xbf16>, vector<32x128xbf16>, vector<128x128xf32> -> vector<128x128xf32>
    %c0_3 = arith.constant 0 : index
    %c0_4 = arith.constant 0 : index
    %4 = vector.load %arg2[%c0_3, %c0_4] : memref<128x32xf32, #tpu.memory_space<vmem>>, vector<128x32xf32>
    %5 = arith.truncf %4 : vector<128x32xf32> to vector<128x32xbf16>
    %c0_5 = arith.constant 0 : index
    %c0_6 = arith.constant 0 : index
    %6 = vector.load %arg6[%c0_5, %c0_6] : memref<32x128xbf16, #tpu.memory_space<vmem>>, vector<32x128xbf16>
    %cst_7 = arith.constant dense<0.000000e+00> : vector<128x128xf32>
    %7 = tpu.matmul %5, %6, %cst_7 {dimension_numbers = #tpu.dot_dimension_numbers<[1], [0], [0], [1], [0, 0, 1, 1], [], []>} : vector<128x32xbf16>, vector<32x128xbf16>, vector<128x128xf32> -> vector<128x128xf32>
    %8 = arith.addf %3, %7 : vector<128x128xf32>
    %c0_8 = arith.constant 0 : index
    %c0_9 = arith.constant 0 : index
    %9 = vector.load %arg3[%c0_8, %c0_9] : memref<128x32xf32, #tpu.memory_space<vmem>>, vector<128x32xf32>
    %10 = arith.truncf %9 : vector<128x32xf32> to vector<128x32xbf16>
    %c0_10 = arith.constant 0 : index
    %c0_11 = arith.constant 0 : index
    %11 = vector.load %arg7[%c0_10, %c0_11] : memref<32x128xbf16, #tpu.memory_space<vmem>>, vector<32x128xbf16>
    %cst_12 = arith.constant dense<0.000000e+00> : vector<128x128xf32>
    %12 = tpu.matmul %10, %11, %cst_12 {dimension_numbers = #tpu.dot_dimension_numbers<[1], [0], [0], [1], [0, 0, 1, 1], [], []>} : vector<128x32xbf16>, vector<32x128xbf16>, vector<128x128xf32> -> vector<128x128xf32>
    %13 = arith.addf %8, %12 : vector<128x128xf32>
    %c0_13 = arith.constant 0 : index
    %c0_14 = arith.constant 0 : index
    %14 = vector.load %arg4[%c0_13, %c0_14] : memref<128x32xf32, #tpu.memory_space<vmem>>, vector<128x32xf32>
    %15 = arith.truncf %14 : vector<128x32xf32> to vector<128x32xbf16>
    %c0_15 = arith.constant 0 : index
    %c0_16 = arith.constant 0 : index
    %16 = vector.load %arg8[%c0_15, %c0_16] : memref<32x128xbf16, #tpu.memory_space<vmem>>, vector<32x128xbf16>
    %cst_17 = arith.constant dense<0.000000e+00> : vector<128x128xf32>
    %17 = tpu.matmul %15, %16, %cst_17 {dimension_numbers = #tpu.dot_dimension_numbers<[1], [0], [0], [1], [0, 0, 1, 1], [], []>} : vector<128x32xbf16>, vector<32x128xbf16>, vector<128x128xf32> -> vector<128x128xf32>
    %18 = arith.addf %13, %17 : vector<128x128xf32>
    %c0_18 = arith.constant 0 : index
    %c0_19 = arith.constant 0 : index
    %19 = vector.load %arg9[%c0_18, %c0_19] : memref<1x128xf32, #tpu.memory_space<vmem>>, vector<1x128xf32>
    %20 = vector.broadcast %19 : vector<1x128xf32> to vector<128x128xf32>
    %21 = arith.addf %18, %20 : vector<128x128xf32>
    %cst_20 = arith.constant 0.000000e+00 : f32
    %22 = vector.broadcast %cst_20 : f32 to vector<128x128xf32>
    %23 = arith.maximumf %21, %22 : vector<128x128xf32>
    %c0_21 = arith.constant 0 : index
    %c0_22 = arith.constant 0 : index
    %24 = vector.load %arg10[%c0_21, %c0_22] : memref<1x128xbf16, #tpu.memory_space<vmem>>, vector<1x128xbf16>
    %25 = arith.truncf %23 : vector<128x128xf32> to vector<128x128xbf16>
    "tpu.trace_start"() <{level = 10 : i32, message = "oh,th->ot"}> : () -> ()
    %cst_23 = arith.constant dense<0.000000e+00> : vector<1x128xf32>
    %26 = tpu.matmul %24, %25, %cst_23 {dimension_numbers = #tpu.dot_dimension_numbers<[1], [1], [0], [0], [0, 0, 1, 0], [], []>} : vector<1x128xbf16>, vector<128x128xbf16>, vector<1x128xf32> -> vector<1x128xf32>
    "tpu.trace_stop"() : () -> ()
    %c0_24 = arith.constant 0 : index
    %c0_25 = arith.constant 0 : index
    %27 = memref.load %arg11[%c0_24, %c0_25] : memref<1x1xf32, #tpu.memory_space<smem>>
    %28 = vector.broadcast %27 : f32 to vector<1x128xf32>
    %29 = arith.addf %26, %28 : vector<1x128xf32>
    %c0_26 = arith.constant 0 : index
    %c0_27 = arith.constant 0 : index
    %30 = vector.load %arg12[%c0_26, %c0_27] : memref<1x128xf32, #tpu.memory_space<vmem>>, vector<1x128xf32>
    tpu.vector_store %arg12[%c0_26, %c0_27], %29 {strides = array<i32>} : memref<1x128xf32, #tpu.memory_space<vmem>>, vector<1x128xf32>,
    return
  }
  func.func @transform_0(%arg0: i32) -> (i32, i32) {
    %c0_i32 = arith.constant 0 : i32
    %c0_i32_0 = arith.constant 0 : i32
    return %arg0, %c0_i32 : i32, i32
  }
  func.func @transform_1(%arg0: i32) -> (i32, i32) {
    %c0_i32 = arith.constant 0 : i32
    %c0_i32_0 = arith.constant 0 : i32
    return %arg0, %c0_i32 : i32, i32
  }
  func.func @transform_2(%arg0: i32) -> (i32, i32) {
    %c0_i32 = arith.constant 0 : i32
    %c0_i32_0 = arith.constant 0 : i32
    return %arg0, %c0_i32 : i32, i32
  }
  func.func @transform_3(%arg0: i32) -> (i32, i32) {
    %c0_i32 = arith.constant 0 : i32
    %c0_i32_0 = arith.constant 0 : i32
    return %arg0, %c0_i32 : i32, i32
  }
  func.func @transform_4(%arg0: i32) -> (i32, i32) {
    %c0_i32 = arith.constant 0 : i32
    %c0_i32_0 = arith.constant 0 : i32
    %c0_i32_1 = arith.constant 0 : i32
    return %c0_i32, %c0_i32_0 : i32, i32
  }
  func.func @transform_5(%arg0: i32) -> (i32, i32) {
    %c0_i32 = arith.constant 0 : i32
    %c0_i32_0 = arith.constant 0 : i32
    %c0_i32_1 = arith.constant 0 : i32
    return %c0_i32, %c0_i32_0 : i32, i32
  }
  func.func @transform_6(%arg0: i32) -> (i32, i32) {
    %c0_i32 = arith.constant 0 : i32
    %c0_i32_0 = arith.constant 0 : i32
    %c0_i32_1 = arith.constant 0 : i32
    return %c0_i32, %c0_i32_0 : i32, i32
  }
  func.func @transform_7(%arg0: i32) -> (i32, i32) {
    %c0_i32 = arith.constant 0 : i32
    %c0_i32_0 = arith.constant 0 : i32
    %c0_i32_1 = arith.constant 0 : i32
    return %c0_i32, %c0_i32_0 : i32, i32
  }
  func.func @transform_8(%arg0: i32) -> (i32, i32) {
    %c0_i32 = arith.constant 0 : i32
    %c0_i32_0 = arith.constant 0 : i32
    %c0_i32_1 = arith.constant 0 : i32
    return %c0_i32, %c0_i32_0 : i32, i32
  }
  func.func @transform_9(%arg0: i32) -> (i32, i32) {
    %c0_i32 = arith.constant 0 : i32
    %c0_i32_0 = arith.constant 0 : i32
    %c0_i32_1 = arith.constant 0 : i32
    return %c0_i32, %c0_i32_0 : i32, i32
  }
  func.func @transform_10(%arg0: i32) -> (i32, i32) {
    %c0_i32 = arith.constant 0 : i32
    %c0_i32_0 = arith.constant 0 : i32
    %c0_i32_1 = arith.constant 0 : i32
    return %c0_i32, %c0_i32_0 : i32, i32
  }
  func.func @transform_11(%arg0: i32) -> (i32, i32) {
    %c0_i32 = arith.constant 0 : i32
    %c0_i32_0 = arith.constant 0 : i32
    return %c0_i32, %arg0 : i32, i32
  }
}

</mosaic_0001>

<llo_original>
// kernel: tpu_custom_call.1
$region0: #{tpu_custom_call.1}
  #allocation0 [shape = 'u32[]', space=smem, size = 0x4, offset = 0x4, fixed_abs, tag = 'smem constant byte address 0x4 - core index']
  #allocation1 [shape = 'u32[72,128]{1,0:T(1,128)}', space=vmem, size = 0x9000, scoped, tag = 'internal scratch']
  #allocation2 [shape = 'f32[1,1]{1,0:T(1,128)S(6)}', space=smem, size = 0x200, scoped, tag = 'scoped memory for tpu_custom_call.1']
  %s0 = inlined_call_operand.vmem [shape: f32[256,32], index: 0, kind: input, shape index: {}]
  %s1 = inlined_call_operand.vmem [shape: f32[256,32], index: 1, kind: input, shape index: {}]
  %s2 = inlined_call_operand.vmem [shape: f32[256,32], index: 2, kind: input, shape index: {}]
  %s3 = inlined_call_operand.vmem [shape: f32[256,32], index: 3, kind: input, shape index: {}]
  %s4 = inlined_call_operand.vmem [shape: bf16[32,128], index: 4, kind: input, shape index: {}]
  %s5 = inlined_call_operand.vmem [shape: bf16[32,128], index: 5, kind: input, shape index: {}]
  %s6 = inlined_call_operand.vmem [shape: bf16[32,128], index: 6, kind: input, shape index: {}]
  %s7 = inlined_call_operand.vmem [shape: bf16[32,128], index: 7, kind: input, shape index: {}]
  %s8 = inlined_call_operand.vmem [shape: f32[1,128], index: 8, kind: input, shape index: {}]
  %s9 = inlined_call_operand.vmem [shape: bf16[1,128], index: 9, kind: input, shape index: {}]
  %s10 = inlined_call_operand.<no memory space> [shape: f32[1,1], index: 10, kind: input, shape index: {}]
  %s11 = inlined_call_operand.hbm [shape: f32[1,256], index: 11, kind: output, shape index: {}]
  %s12 = sld [smem:[#allocation0]]
  $region77: #{tpu_custom_call.1} parent=0
    _
  %s14 = ssub.s32 1, %s12
  %s15 = scalar_select 0, %s14, %s12
  %16 = sst [smem:[#allocation2]] %s10
  $region1: #{tpu_custom_call.1} parent=0
    #allocation3 [shape = 'u8[1024]{0}', space=vmem, size = 0x400, scoped, tag = 'output window, operand 0']
    #allocation4 [shape = 's32[2]{0}', space=sflag, size = 0x8, scoped, tag = 'scoped memory for tpu_custom_call.1']
    %17 = vsyncpa [#allocation4], 0
    %s18 = scalar_lea.sflag [#allocation4], 1
    %19 = vsyncpa %s18, 0
    loop: start=0, step=1, limit=4
    $region2: #{tpu_custom_call.1} parent=1 // loop_pre_header
      _
    $region3: #{tpu_custom_call.1} parent=1 // loop_header
      %s21 = sphi 0, %s25
      %p22 = scmp.ge.s32.totalorder %s21, 4
      %s31 = sphi 0, %s33
      %s34 = sphi 0, %s31
      %s35 = sphi 0, %s34
      %s51 = sphi 0, %s35
      %s57 = sphi 0, %s59
      %s60 = sphi 0, %s57
      %s61 = sphi 0, %s60
      %s77 = sphi 0, %s61
      %s83 = sphi 0, %s85
      %s86 = sphi 0, %s83
      %s87 = sphi 0, %s86
      %s103 = sphi 0, %s87
      %s109 = sphi 0, %s111
      %s112 = sphi 0, %s109
      %s113 = sphi 0, %s112
      %s129 = sphi 0, %s113
      %s133 = sphi 0, %s133
      %s135 = sphi 0, %s133
      %s136 = sphi 0, %s135
      %s150 = sphi 0, %s136
      %s154 = sphi 0, %s154
      %s156 = sphi 0, %s154
      %s157 = sphi 0, %s156
      %s171 = sphi 0, %s157
      %s175 = sphi 0, %s175
      %s177 = sphi 0, %s175
      %s178 = sphi 0, %s177
      %s192 = sphi 0, %s178
      %s196 = sphi 0, %s196
      %s198 = sphi 0, %s196
      %s199 = sphi 0, %s198
      %s213 = sphi 0, %s199
      %s217 = sphi 0, %s217
      %s219 = sphi 0, %s217
      %s220 = sphi 0, %s219
      %s234 = sphi 0, %s220
      %s238 = sphi 0, %s238
      %s240 = sphi 0, %s238
      %s241 = sphi 0, %s240
      %s255 = sphi 0, %s241
      %s259 = sphi 0, %s259
      %s261 = sphi 0, %s259
      %s262 = sphi 0, %s261
      %s276 = sphi 0, %s262
      %s282 = sphi 0, %s284
      %s285 = sphi 0, %s282
      %s286 = sphi 0, %s285
      %s302 = sphi 0, %s286
    $region4: #{tpu_custom_call.1} parent=1 // loop_header_branch
      %24 = sbr.rel (%p22) target = $region8
    $region5: #{tpu_custom_call.1} parent=1 // loop_body
      %s26 = ssub.s32 %s21, 1
      %s27 = ssub.s32 %s21, 2
      %s28 = sadd.s32 %s21, 1
      %s29 = ssub.s32 %s21, %s28
      %p30 = scmp.eq.s32.totalorder %s29, 0
      %s32 = sadd.s32 %s31, 1
      %s33 = scalar_select %p30, %s31, %s32
      %p36 = pneg %p30
      %p37 = scmp.eq.s32.totalorder %s21, 1
      %p38 = por %p36, %p37
      %p39 = scmp.ne.s32.totalorder %s31, %s34
      %p40 = scmp.eq.s32.totalorder %s21, 0
      %p41 = por %p39, %p40
      %p42 = scmp.ne.s32.totalorder %s31, %s34
      %p43 = scmp.eq.s32.totalorder %s26, 1
      %p44 = por %p42, %p43
      %p45 = scmp.ne.s32.totalorder %s34, %s35
      %p46 = scmp.eq.s32.totalorder %s26, 0
      %p47 = por %p45, %p46
      %p48 = scmp.ne.s32.totalorder %s34, %s35
      %p49 = scmp.eq.s32.totalorder %s27, 1
      %p50 = por %p48, %p49
      %p52 = scmp.ne.s32.totalorder %s35, %s51
      %p53 = scmp.eq.s32.totalorder %s27, 0
      %p54 = por %p52, %p53
      %s55 = ssub.s32 %s21, %s28
      %p56 = scmp.eq.s32.totalorder %s55, 0
      %s58 = sadd.s32 %s57, 1
      %s59 = scalar_select %p56, %s57, %s58
      %p62 = pneg %p56
      %p63 = scmp.eq.s32.totalorder %s21, 1
      %p64 = por %p62, %p63
      %p65 = scmp.ne.s32.totalorder %s57, %s60
      %p66 = scmp.eq.s32.totalorder %s21, 0
      %p67 = por %p65, %p66
      %p68 = scmp.ne.s32.totalorder %s57, %s60
      %p69 = scmp.eq.s32.totalorder %s26, 1
      %p70 = por %p68, %p69
      %p71 = scmp.ne.s32.totalorder %s60, %s61
      %p72 = scmp.eq.s32.totalorder %s26, 0
      %p73 = por %p71, %p72
      %p74 = scmp.ne.s32.totalorder %s60, %s61
      %p75 = scmp.eq.s32.totalorder %s27, 1
      %p76 = por %p74, %p75
      %p78 = scmp.ne.s32.totalorder %s61, %s77
      %p79 = scmp.eq.s32.totalorder %s27, 0
      %p80 = por %p78, %p79
      %s81 = ssub.s32 %s21, %s28
      %p82 = scmp.eq.s32.totalorder %s81, 0
      %s84 = sadd.s32 %s83, 1
      %s85 = scalar_select %p82, %s83, %s84
      %p88 = pneg %p82
      %p89 = scmp.eq.s32.totalorder %s21, 1
      %p90 = por %p88, %p89
      %p91 = scmp.ne.s32.totalorder %s83, %s86
      %p92 = scmp.eq.s32.totalorder %s21, 0
      %p93 = por %p91, %p92
      %p94 = scmp.ne.s32.totalorder %s83, %s86
      %p95 = scmp.eq.s32.totalorder %s26, 1
      %p96 = por %p94, %p95
      %p97 = scmp.ne.s32.totalorder %s86, %s87
      %p98 = scmp.eq.s32.totalorder %s26, 0
      %p99 = por %p97, %p98
      %p100 = scmp.ne.s32.totalorder %s86, %s87
      %p101 = scmp.eq.s32.totalorder %s27, 1
      %p102 = por %p100, %p101
      %p104 = scmp.ne.s32.totalorder %s87, %s103
      %p105 = scmp.eq.s32.totalorder %s27, 0
      %p106 = por %p104, %p105
      %s107 = ssub.s32 %s21, %s28
      %p108 = scmp.eq.s32.totalorder %s107, 0
      %s110 = sadd.s32 %s109, 1
      %s111 = scalar_select %p108, %s109, %s110
      %p114 = pneg %p108
      %p115 = scmp.eq.s32.totalorder %s21, 1
      %p116 = por %p114, %p115
      %p117 = scmp.ne.s32.totalorder %s109, %s112
      %p118 = scmp.eq.s32.totalorder %s21, 0
      %p119 = por %p117, %p118
      %p120 = scmp.ne.s32.totalorder %s109, %s112
      %p121 = scmp.eq.s32.totalorder %s26, 1
      %p122 = por %p120, %p121
      %p123 = scmp.ne.s32.totalorder %s112, %s113
      %p124 = scmp.eq.s32.totalorder %s26, 0
      %p125 = por %p123, %p124
      %p126 = scmp.ne.s32.totalorder %s112, %s113
      %p127 = scmp.eq.s32.totalorder %s27, 1
      %p128 = por %p126, %p127
      %p130 = scmp.ne.s32.totalorder %s113, %s129
      %p131 = scmp.eq.s32.totalorder %s27, 0
      %p132 = por %p130, %p131
      %s134 = sadd.s32 %s133, 1
      %p137 = scmp.eq.s32.totalorder %s21, 1
      %p138 = scmp.ne.s32.totalorder %s133, %s135
      %p139 = scmp.eq.s32.totalorder %s21, 0
      %p140 = por %p138, %p139
      %p141 = scmp.ne.s32.totalorder %s133, %s135
      %p142 = scmp.eq.s32.totalorder %s26, 1
      %p143 = por %p141, %p142
      %p144 = scmp.ne.s32.totalorder %s135, %s136
      %p145 = scmp.eq.s32.totalorder %s26, 0
      %p146 = por %p144, %p145
      %p147 = scmp.ne.s32.totalorder %s135, %s136
      %p148 = scmp.eq.s32.totalorder %s27, 1
      %p149 = por %p147, %p148
      %p151 = scmp.ne.s32.totalorder %s136, %s150
      %p152 = scmp.eq.s32.totalorder %s27, 0
      %p153 = por %p151, %p152
      %s155 = sadd.s32 %s154, 1
      %p158 = scmp.eq.s32.totalorder %s21, 1
      %p159 = scmp.ne.s32.totalorder %s154, %s156
      %p160 = scmp.eq.s32.totalorder %s21, 0
      %p161 = por %p159, %p160
      %p162 = scmp.ne.s32.totalorder %s154, %s156
      %p163 = scmp.eq.s32.totalorder %s26, 1
      %p164 = por %p162, %p163
      %p165 = scmp.ne.s32.totalorder %s156, %s157
      %p166 = scmp.eq.s32.totalorder %s26, 0
      %p167 = por %p165, %p166
      %p168 = scmp.ne.s32.totalorder %s156, %s157
      %p169 = scmp.eq.s32.totalorder %s27, 1
      %p170 = por %p168, %p169
      %p172 = scmp.ne.s32.totalorder %s157, %s171
      %p173 = scmp.eq.s32.totalorder %s27, 0
      %p174 = por %p172, %p173
      %s176 = sadd.s32 %s175, 1
      %p179 = scmp.eq.s32.totalorder %s21, 1
      %p180 = scmp.ne.s32.totalorder %s175, %s177
      %p181 = scmp.eq.s32.totalorder %s21, 0
      %p182 = por %p180, %p181
      %p183 = scmp.ne.s32.totalorder %s175, %s177
      %p184 = scmp.eq.s32.totalorder %s26, 1
      %p185 = por %p183, %p184
      %p186 = scmp.ne.s32.totalorder %s177, %s178
      %p187 = scmp.eq.s32.totalorder %s26, 0
      %p188 = por %p186, %p187
      %p189 = scmp.ne.s32.totalorder %s177, %s178
      %p190 = scmp.eq.s32.totalorder %s27, 1
      %p191 = por %p189, %p190
      %p193 = scmp.ne.s32.totalorder %s178, %s192
      %p194 = scmp.eq.s32.totalorder %s27, 0
      %p195 = por %p193, %p194
      %s197 = sadd.s32 %s196, 1
      %p200 = scmp.eq.s32.totalorder %s21, 1
      %p201 = scmp.ne.s32.totalorder %s196, %s198
      %p202 = scmp.eq.s32.totalorder %s21, 0
      %p203 = por %p201, %p202
      %p204 = scmp.ne.s32.totalorder %s196, %s198
      %p205 = scmp.eq.s32.totalorder %s26, 1
      %p206 = por %p204, %p205
      %p207 = scmp.ne.s32.totalorder %s198, %s199
      %p208 = scmp.eq.s32.totalorder %s26, 0
      %p209 = por %p207, %p208
      %p210 = scmp.ne.s32.totalorder %s198, %s199
      %p211 = scmp.eq.s32.totalorder %s27, 1
      %p212 = por %p210, %p211
      %p214 = scmp.ne.s32.totalorder %s199, %s213
      %p215 = scmp.eq.s32.totalorder %s27, 0
      %p216 = por %p214, %p215
      %s218 = sadd.s32 %s217, 1
      %p221 = scmp.eq.s32.totalorder %s21, 1
      %p222 = scmp.ne.s32.totalorder %s217, %s219
      %p223 = scmp.eq.s32.totalorder %s21, 0
      %p224 = por %p222, %p223
      %p225 = scmp.ne.s32.totalorder %s217, %s219
      %p226 = scmp.eq.s32.totalorder %s26, 1
      %p227 = por %p225, %p226
      %p228 = scmp.ne.s32.totalorder %s219, %s220
      %p229 = scmp.eq.s32.totalorder %s26, 0
      %p230 = por %p228, %p229
      %p231 = scmp.ne.s32.totalorder %s219, %s220
      %p232 = scmp.eq.s32.totalorder %s27, 1
      %p233 = por %p231, %p232
      %p235 = scmp.ne.s32.totalorder %s220, %s234
      %p236 = scmp.eq.s32.totalorder %s27, 0
      %p237 = por %p235, %p236
      %s239 = sadd.s32 %s238, 1
      %p242 = scmp.eq.s32.totalorder %s21, 1
      %p243 = scmp.ne.s32.totalorder %s238, %s240
      %p244 = scmp.eq.s32.totalorder %s21, 0
      %p245 = por %p243, %p244
      %p246 = scmp.ne.s32.totalorder %s238, %s240
      %p247 = scmp.eq.s32.totalorder %s26, 1
      %p248 = por %p246, %p247
      %p249 = scmp.ne.s32.totalorder %s240, %s241
      %p250 = scmp.eq.s32.totalorder %s26, 0
      %p251 = por %p249, %p250
      %p252 = scmp.ne.s32.totalorder %s240, %s241
      %p253 = scmp.eq.s32.totalorder %s27, 1
      %p254 = por %p252, %p253
      %p256 = scmp.ne.s32.totalorder %s241, %s255
      %p257 = scmp.eq.s32.totalorder %s27, 0
      %p258 = por %p256, %p257
      %s260 = sadd.s32 %s259, 1
      %p263 = scmp.eq.s32.totalorder %s21, 1
      %p264 = scmp.ne.s32.totalorder %s259, %s261
      %p265 = scmp.eq.s32.totalorder %s21, 0
      %p266 = por %p264, %p265
      %p267 = scmp.ne.s32.totalorder %s259, %s261
      %p268 = scmp.eq.s32.totalorder %s26, 1
      %p269 = por %p267, %p268
      %p270 = scmp.ne.s32.totalorder %s261, %s262
      %p271 = scmp.eq.s32.totalorder %s26, 0
      %p272 = por %p270, %p271
      %p273 = scmp.ne.s32.totalorder %s261, %s262
      %p274 = scmp.eq.s32.totalorder %s27, 1
      %p275 = por %p273, %p274
      %p277 = scmp.ne.s32.totalorder %s262, %s276
      %p278 = scmp.eq.s32.totalorder %s27, 0
      %p279 = por %p277, %p278
      %s280 = ssub.s32 %s21, %s28
      %p281 = scmp.eq.s32.totalorder %s280, 0
      %s283 = sadd.s32 %s282, 1
      %s284 = scalar_select %p281, %s282, %s283
      %p287 = pneg %p281
      %p288 = scmp.eq.s32.totalorder %s21, 1
      %p289 = por %p287, %p288
      %p290 = scmp.ne.s32.totalorder %s282, %s285
      %p291 = scmp.eq.s32.totalorder %s21, 0
      %p292 = por %p290, %p291
      %p293 = scmp.ne.s32.totalorder %s282, %s285
      %p294 = scmp.eq.s32.totalorder %s26, 1
      %p295 = por %p293, %p294
      %p296 = scmp.ne.s32.totalorder %s285, %s286
      %p297 = scmp.eq.s32.totalorder %s26, 0
      %p298 = por %p296, %p297
      %p299 = scmp.ne.s32.totalorder %s285, %s286
      %p300 = scmp.eq.s32.totalorder %s27, 1
      %p301 = por %p299, %p300
      %p303 = scmp.ne.s32.totalorder %s286, %s302
      %p304 = scmp.eq.s32.totalorder %s27, 0
      %p305 = por %p303, %p304
      %p306 = scmp.le.s32.totalorder 1, %s21
      %p307 = scmp.lt.s32.totalorder %s21, 3
      %p308 = pnand %p306, %p307
      %p309 = pneg %p308
      // Predicated region
      $region9: #{tpu_custom_call.1} parent=5 // pred_check
        _
      $region10: #{tpu_custom_call.1} parent=5 // pred_check_branch
        %311 = sbr.rel (%p308) target = $region12
      $region11: #{tpu_custom_call.1} parent=5 // pred_region
        %s312 = ssub.s32 %s21, 1
        // Predicated region
        $region13: #{tpu_custom_call.1} parent=11 // pred_check
          %p313 = pneg %p146
        $region14: #{tpu_custom_call.1} parent=11 // pred_check_branch
          %315 = sbr.rel (%p313) target = $region16
        $region15: #{tpu_custom_call.1} parent=11 // pred_region
          _
        $region16: #{tpu_custom_call.1} parent=11 // pred_fallthru
          _
        // Predicated region
        $region17: #{tpu_custom_call.1} parent=11 // pred_check
          %p316 = pneg %p167
        $region18: #{tpu_custom_call.1} parent=11 // pred_check_branch
          %318 = sbr.rel (%p316) target = $region20
        $region19: #{tpu_custom_call.1} parent=11 // pred_region
          _
        $region20: #{tpu_custom_call.1} parent=11 // pred_fallthru
          _
        // Predicated region
        $region21: #{tpu_custom_call.1} parent=11 // pred_check
          %p319 = pneg %p188
        $region22: #{tpu_custom_call.1} parent=11 // pred_check_branch
          %321 = sbr.rel (%p319) target = $region24
        $region23: #{tpu_custom_call.1} parent=11 // pred_region
          _
        $region24: #{tpu_custom_call.1} parent=11 // pred_fallthru
          _
        // Predicated region
        $region25: #{tpu_custom_call.1} parent=11 // pred_check
          %p322 = pneg %p209
        $region26: #{tpu_custom_call.1} parent=11 // pred_check_branch
          %324 = sbr.rel (%p322) target = $region28
        $region27: #{tpu_custom_call.1} parent=11 // pred_region
          _
        $region28: #{tpu_custom_call.1} parent=11 // pred_fallthru
          _
        // Predicated region
        $region29: #{tpu_custom_call.1} parent=11 // pred_check
          %p325 = pneg %p230
        $region30: #{tpu_custom_call.1} parent=11 // pred_check_branch
          %327 = sbr.rel (%p325) target = $region32
        $region31: #{tpu_custom_call.1} parent=11 // pred_region
          _
        $region32: #{tpu_custom_call.1} parent=11 // pred_fallthru
          _
        // Predicated region
        $region33: #{tpu_custom_call.1} parent=11 // pred_check
          %p328 = pneg %p251
        $region34: #{tpu_custom_call.1} parent=11 // pred_check_branch
          %330 = sbr.rel (%p328) target = $region36
        $region35: #{tpu_custom_call.1} parent=11 // pred_region
          _
        $region36: #{tpu_custom_call.1} parent=11 // pred_fallthru
          _
        // Predicated region
        $region37: #{tpu_custom_call.1} parent=11 // pred_check
          %p331 = pneg %p272
        $region38: #{tpu_custom_call.1} parent=11 // pred_check_branch
          %333 = sbr.rel (%p331) target = $region40
        $region39: #{tpu_custom_call.1} parent=11 // pred_region
          _
        $region40: #{tpu_custom_call.1} parent=11 // pred_fallthru
          _
      $region12: #{tpu_custom_call.1} parent=5 // pred_fallthru
        _
      %p334 = scmp.lt.s32.totalorder %s21, 2
      // Predicated region
      $region41: #{tpu_custom_call.1} parent=5 // pred_check
        %p335 = pneg %p334
      $region42: #{tpu_custom_call.1} parent=5 // pred_check_branch
        %337 = sbr.rel (%p335) target = $region44
      $region43: #{tpu_custom_call.1} parent=5 // pred_region
        // Predicated region
        $region45: #{tpu_custom_call.1} parent=43 // pred_check
          %p338 = pneg %p41
        $region46: #{tpu_custom_call.1} parent=43 // pred_check_branch
          %340 = sbr.rel (%p338) target = $region48
        $region47: #{tpu_custom_call.1} parent=43 // pred_region
          %s341 = smul.u32 16, %s21
          %p342 = scmp.lt.s32.totalorder %s341, 31
          %s343 = scalar_select %p342, %s341, 31
          %s344 = smul.addr %s343, 8
          %s345 = scalar_lea.vmem %s0, %s344
          %s346 = smul.u32 16, %s21
        $region48: #{tpu_custom_call.1} parent=43 // pred_fallthru
          _
        // Predicated region
        $region49: #{tpu_custom_call.1} parent=43 // pred_check
          %p347 = pneg %p67
        $region50: #{tpu_custom_call.1} parent=43 // pred_check_branch
          %349 = sbr.rel (%p347) target = $region52
        $region51: #{tpu_custom_call.1} parent=43 // pred_region
          %s350 = smul.u32 16, %s21
          %p351 = scmp.lt.s32.totalorder %s350, 31
          %s352 = scalar_select %p351, %s350, 31
          %s353 = smul.addr %s352, 8
          %s354 = scalar_lea.vmem %s1, %s353
          %s355 = smul.u32 16, %s21
        $region52: #{tpu_custom_call.1} parent=43 // pred_fallthru
          _
        // Predicated region
        $region53: #{tpu_custom_call.1} parent=43 // pred_check
          %p356 = pneg %p93
        $region54: #{tpu_custom_call.1} parent=43 // pred_check_branch
          %358 = sbr.rel (%p356) target = $region56
        $region55: #{tpu_custom_call.1} parent=43 // pred_region
          %s359 = smul.u32 16, %s21
          %p360 = scmp.lt.s32.totalorder %s359, 31
          %s361 = scalar_select %p360, %s359, 31
          %s362 = smul.addr %s361, 8
          %s363 = scalar_lea.vmem %s2, %s362
          %s364 = smul.u32 16, %s21
        $region56: #{tpu_custom_call.1} parent=43 // pred_fallthru
          _
        // Predicated region
        $region57: #{tpu_custom_call.1} parent=43 // pred_check
          %p365 = pneg %p119
        $region58: #{tpu_custom_call.1} parent=43 // pred_check_branch
          %367 = sbr.rel (%p365) target = $region60
        $region59: #{tpu_custom_call.1} parent=43 // pred_region
          %s368 = smul.u32 16, %s21
          %p369 = scmp.lt.s32.totalorder %s368, 31
          %s370 = scalar_select %p369, %s368, 31
          %s371 = smul.addr %s370, 8
          %s372 = scalar_lea.vmem %s3, %s371
          %s373 = smul.u32 16, %s21
        $region60: #{tpu_custom_call.1} parent=43 // pred_fallthru
          _
      $region44: #{tpu_custom_call.1} parent=5 // pred_fallthru
        _
      %p374 = scmp.le.s32.totalorder 1, %s21
      %p375 = scmp.lt.s32.totalorder %s21, 3
      %p376 = pnand %p374, %p375
      %p377 = pneg %p376
      // Predicated region
      $region61: #{tpu_custom_call.1} parent=5 // pred_check
        _
      $region62: #{tpu_custom_call.1} parent=5 // pred_check_branch
        %379 = sbr.rel (%p376) target = $region64
      $region63: #{tpu_custom_call.1} parent=5 // pred_region
        %s380 = ssub.s32 %s21, 1
        %s381 = smul.u32 16, %s26
        %p382 = scmp.lt.s32.totalorder %s381, 31
        %s383 = scalar_select %p382, %s381, 31
        %s384 = smul.addr %s383, 8
        %s385 = scalar_lea.vmem %s0, %s384
        %p386 = pneg %p47
        %p387 = pneg %p44
        %s388 = smul.u32 16, %s26
        %p389 = scmp.lt.s32.totalorder %s388, 31
        %s390 = scalar_select %p389, %s388, 31
        %s391 = smul.addr %s390, 8
        %s392 = scalar_lea.vmem %s1, %s391
        %p393 = pneg %p73
        %p394 = pneg %p70
        %s395 = smul.u32 16, %s26
        %p396 = scmp.lt.s32.totalorder %s395, 31
        %s397 = scalar_select %p396, %s395, 31
        %s398 = smul.addr %s397, 8
        %s399 = scalar_lea.vmem %s2, %s398
        %p400 = pneg %p99
        %p401 = pneg %p96
        %s402 = smul.u32 16, %s26
        %p403 = scmp.lt.s32.totalorder %s402, 31
        %s404 = scalar_select %p403, %s402, 31
        %s405 = smul.addr %s404, 8
        %s406 = scalar_lea.vmem %s3, %s405
        %p407 = pneg %p125
        %p408 = pneg %p122
        %p409 = pneg %p146
        %p410 = pneg %p143
        %p411 = pneg %p167
        %p412 = pneg %p164
        %p413 = pneg %p188
        %p414 = pneg %p185
        %p415 = pneg %p209
        %p416 = pneg %p206
        %p417 = pneg %p230
        %p418 = pneg %p227
        %p419 = pneg %p251
        %p420 = pneg %p248
        %p421 = pneg %p272
        %p422 = pneg %p269
        %p423 = pneg %p298
        %p424 = pneg %p295
        %s425 = sand.u32 %s285, 1
        %s426 = scalar_lea.sflag [#allocation4], %s425
        %s427 = sand.u32 %s285, 1
        %s428 = scalar_lea.vmem [#allocation3], %s427
        %s429 = smul.u32 16, %s26
        %p430 = scmp.lt.s32.totalorder %s429, 31
        %s431 = scalar_select %p430, %s429, 31
        %s432 = smul.addr %s431, 8
        %s433 = scalar_lea.vmem %s0, %s432
        %s434 = smul.u32 16, %s26
        %s435 = smul.u32 16, %s26
        %p436 = scmp.lt.s32.totalorder %s435, 31
        %s437 = scalar_select %p436, %s435, 31
        %s438 = smul.addr %s437, 8
        %s439 = scalar_lea.vmem %s1, %s438
        %s440 = smul.u32 16, %s26
        %s441 = smul.u32 16, %s26
        %p442 = scmp.lt.s32.totalorder %s441, 31
        %s443 = scalar_select %p442, %s441, 31
        %s444 = smul.addr %s443, 8
        %s445 = scalar_lea.vmem %s2, %s444
        %s446 = smul.u32 16, %s26
        %s447 = smul.u32 16, %s26
        %p448 = scmp.lt.s32.totalorder %s447, 31
        %s449 = scalar_select %p448, %s447, 31
        %s450 = smul.addr %s449, 8
        %s451 = scalar_lea.vmem %s3, %s450
        %s452 = smul.u32 16, %s26
        %v454 = vld [vmem:[%s433] sm:$0xff]
        %v455 = vld [vmem:[%s433 + $0x8] sm:$0xff]
        %v456 = vld [vmem:[%s433 + $0x10] sm:$0xff]
        %v457 = vld [vmem:[%s433 + $0x18] sm:$0xff]
        %v458 = vld [vmem:[%s433 + $0x20] sm:$0xff]
        %v459 = vld [vmem:[%s433 + $0x28] sm:$0xff]
        %v460 = vld [vmem:[%s433 + $0x30] sm:$0xff]
        %v461 = vld [vmem:[%s433 + $0x38] sm:$0xff]
        %v462 = vld [vmem:[%s433 + $0x40] sm:$0xff]
        %v463 = vld [vmem:[%s433 + $0x48] sm:$0xff]
        %v464 = vld [vmem:[%s433 + $0x50] sm:$0xff]
        %v465 = vld [vmem:[%s433 + $0x58] sm:$0xff]
        %v466 = vld [vmem:[%s433 + $0x60] sm:$0xff]
        %v467 = vld [vmem:[%s433 + $0x68] sm:$0xff]
        %v468 = vld [vmem:[%s433 + $0x70] sm:$0xff]
        %v469 = vld [vmem:[%s433 + $0x78] sm:$0xff]
        %v470 = vpack.c.bf16 %v455, %v454
        %v471 = vpack.c.bf16 %v457, %v456
        %v472 = vpack.c.bf16 %v459, %v458
        %v473 = vpack.c.bf16 %v461, %v460
        %v474 = vpack.c.bf16 %v463, %v462
        %v475 = vpack.c.bf16 %v465, %v464
        %v476 = vpack.c.bf16 %v467, %v466
        %v477 = vpack.c.bf16 %v469, %v468
        %v478 = vld [vmem:[%s4] sm:$0xf]
        %v479 = vld [vmem:[%s4 + $0x4] sm:$0xf]
        %v480 = vld [vmem:[%s4 + $0x8] sm:$0xf]
        %v481 = vld [vmem:[%s4 + $0xc] sm:$0xf]
        %v482 = vld [vmem:[%s439] sm:$0xff]
        %v483 = vld [vmem:[%s439 + $0x8] sm:$0xff]
        %v484 = vld [vmem:[%s439 + $0x10] sm:$0xff]
        %v485 = vld [vmem:[%s439 + $0x18] sm:$0xff]
        %v486 = vld [vmem:[%s439 + $0x20] sm:$0xff]
        %v487 = vld [vmem:[%s439 + $0x28] sm:$0xff]
        %v488 = vld [vmem:[%s439 + $0x30] sm:$0xff]
        %v489 = vld [vmem:[%s439 + $0x38] sm:$0xff]
        %v490 = vld [vmem:[%s439 + $0x40] sm:$0xff]
        %v491 = vld [vmem:[%s439 + $0x48] sm:$0xff]
        %v492 = vld [vmem:[%s439 + $0x50] sm:$0xff]
        %v493 = vld [vmem:[%s439 + $0x58] sm:$0xff]
        %v494 = vld [vmem:[%s439 + $0x60] sm:$0xff]
        %v495 = vld [vmem:[%s439 + $0x68] sm:$0xff]
        %v496 = vld [vmem:[%s439 + $0x70] sm:$0xff]
        %v497 = vld [vmem:[%s439 + $0x78] sm:$0xff]
        %v498 = vpack.c.bf16 %v483, %v482
        %v499 = vpack.c.bf16 %v485, %v484
        %v500 = vpack.c.bf16 %v487, %v486
        %v501 = vpack.c.bf16 %v489, %v488
        %v502 = vpack.c.bf16 %v491, %v490
        %v503 = vpack.c.bf16 %v493, %v492
        %v504 = vpack.c.bf16 %v495, %v494
        %v505 = vpack.c.bf16 %v497, %v496
        %v506 = vld [vmem:[%s5] sm:$0xf]
        %v507 = vld [vmem:[%s5 + $0x4] sm:$0xf]
        %v508 = vld [vmem:[%s5 + $0x8] sm:$0xf]
        %v509 = vld [vmem:[%s5 + $0xc] sm:$0xf]
        %v514 = vunpack.c.l.b16 %v506
        %v515 = vunpack.c.l.b16 %v507
        %v516 = vunpack.c.l.b16 %v508
        %v517 = vunpack.c.l.b16 %v509
        %v518 = vpack.c.b16 %v515, %v514
        %v519 = vpack.c.b16 %v517, %v516
        %vm522 = vcmask 261120
        %v524 = vsel %vm522, %v498, 0
        %v527 = vsel %vm522, %v499, 0
        %v530 = vsel %vm522, %v500, 0
        %v533 = vsel %vm522, %v501, 0
        %v536 = vsel %vm522, %v502, 0
        %v539 = vsel %vm522, %v503, 0
        %v542 = vsel %vm522, %v504, 0
        %v545 = vsel %vm522, %v505, 0
        %547 = vmatpush.bf16.msra.mxu0 0
        %548 = vmatpush.bf16.msra.mxu0 0
        %549 = vmatpush.bf16.msra.mxu0 0
        %550 = vmatpush.bf16.msra.mxu0 0
        %551 = vmatpush.bf16.msra.mxu0 0
        %552 = vmatpush.bf16.msra.mxu0 0
        %553 = vmatpush.bf16.msra.mxu0 %v519
        %554 = vmatpush.bf16.msra.mxu0 %v518
        %555 = vmatmul.bf16.gmra.mxu0 %v524
        %v556 = vpop.f32.mrf.mxu0
        %v557 = vadd.f32 0.0, %v556
        %v558 = vpop.f32.mrf.mxu0
        %v559 = vadd.f32 0.0, %v558
        %560 = vmatmul.bf16.gmra.mxu0 %v527
        %v561 = vpop.f32.mrf.mxu0
        %v562 = vadd.f32 0.0, %v561
        %v563 = vpop.f32.mrf.mxu0
        %v564 = vadd.f32 0.0, %v563
        %565 = vmatmul.bf16.gmra.mxu0 %v530
        %v566 = vpop.f32.mrf.mxu0
        %v567 = vadd.f32 0.0, %v566
        %v568 = vpop.f32.mrf.mxu0
        %v569 = vadd.f32 0.0, %v568
        %570 = vmatmul.bf16.gmra.mxu0 %v533
        %v571 = vpop.f32.mrf.mxu0
        %v572 = vadd.f32 0.0, %v571
        %v573 = vpop.f32.mrf.mxu0
        %v574 = vadd.f32 0.0, %v573
        %575 = vmatmul.bf16.gmra.mxu0 %v536
        %v576 = vpop.f32.mrf.mxu0
        %v577 = vadd.f32 0.0, %v576
        %v578 = vpop.f32.mrf.mxu0
        %v579 = vadd.f32 0.0, %v578
        %580 = vmatmul.bf16.gmra.mxu0 %v539
        %v581 = vpop.f32.mrf.mxu0
        %v582 = vadd.f32 0.0, %v581
        %v583 = vpop.f32.mrf.mxu0
        %v584 = vadd.f32 0.0, %v583
        %585 = vmatmul.bf16.gmra.mxu0 %v542
        %v586 = vpop.f32.mrf.mxu0
        %v587 = vadd.f32 0.0, %v586
        %v588 = vpop.f32.mrf.mxu0
        %v589 = vadd.f32 0.0, %v588
        %590 = vmatmul.bf16.gmra.mxu0 %v545
        %v591 = vpop.f32.mrf.mxu0
        %v592 = vadd.f32 0.0, %v591
        %v593 = vpop.f32.mrf.mxu0
        %v594 = vadd.f32 0.0, %v593
        %595 = vdwg.mxu0
        %v600 = vunpack.c.l.b16 %v478
        %v601 = vunpack.c.l.b16 %v479
        %v602 = vunpack.c.l.b16 %v480
        %v603 = vunpack.c.l.b16 %v481
        %v604 = vpack.c.b16 %v601, %v600
        %v605 = vpack.c.b16 %v603, %v602
        %v609 = vsel %vm522, %v470, 0
        %v612 = vsel %vm522, %v471, 0
        %v615 = vsel %vm522, %v472, 0
        %v618 = vsel %vm522, %v473, 0
        %v621 = vsel %vm522, %v474, 0
        %v624 = vsel %vm522, %v475, 0
        %v627 = vsel %vm522, %v476, 0
        %v630 = vsel %vm522, %v477, 0
        %632 = vmatpush.bf16.msra.mxu0 0
        %633 = vmatpush.bf16.msra.mxu0 0
        %634 = vmatpush.bf16.msra.mxu0 0
        %635 = vmatpush.bf16.msra.mxu0 0
        %636 = vmatpush.bf16.msra.mxu0 0
        %637 = vmatpush.bf16.msra.mxu0 0
        %638 = vmatpush.bf16.msra.mxu0 %v605
        %639 = vmatpush.bf16.msra.mxu0 %v604
        %640 = vmatmul.bf16.gmra.mxu0 %v609
        %v641 = vpop.f32.mrf.mxu0
        %v642 = vadd.f32 %v557, %v641
        %v643 = vpop.f32.mrf.mxu0
        %v644 = vadd.f32 %v559, %v643
        %645 = vmatmul.bf16.gmra.mxu0 %v612
        %v646 = vpop.f32.mrf.mxu0
        %v647 = vadd.f32 %v562, %v646
        %v648 = vpop.f32.mrf.mxu0
        %v649 = vadd.f32 %v564, %v648
        %650 = vmatmul.bf16.gmra.mxu0 %v615
        %v651 = vpop.f32.mrf.mxu0
        %v652 = vadd.f32 %v567, %v651
        %v653 = vpop.f32.mrf.mxu0
        %v654 = vadd.f32 %v569, %v653
        %655 = vmatmul.bf16.gmra.mxu0 %v618
        %v656 = vpop.f32.mrf.mxu0
        %v657 = vadd.f32 %v572, %v656
        %v658 = vpop.f32.mrf.mxu0
        %v659 = vadd.f32 %v574, %v658
        %660 = vmatmul.bf16.gmra.mxu0 %v621
        %v661 = vpop.f32.mrf.mxu0
        %v662 = vadd.f32 %v577, %v661
        %v663 = vpop.f32.mrf.mxu0
        %v664 = vadd.f32 %v579, %v663
        %665 = vmatmul.bf16.gmra.mxu0 %v624
        %v666 = vpop.f32.mrf.mxu0
        %v667 = vadd.f32 %v582, %v666
        %v668 = vpop.f32.mrf.mxu0
        %v669 = vadd.f32 %v584, %v668
        %670 = vmatmul.bf16.gmra.mxu0 %v627
        %v671 = vpop.f32.mrf.mxu0
        %v672 = vadd.f32 %v587, %v671
        %v673 = vpop.f32.mrf.mxu0
        %v674 = vadd.f32 %v589, %v673
        %675 = vmatmul.bf16.gmra.mxu0 %v630
        %v676 = vpop.f32.mrf.mxu0
        %v677 = vadd.f32 %v592, %v676
        %v678 = vpop.f32.mrf.mxu0
        %v679 = vadd.f32 %v594, %v678
        %680 = vdwg.mxu0
        %v681 = vld [vmem:[%s445] sm:$0xff]
        %v682 = vld [vmem:[%s445 + $0x8] sm:$0xff]
        %v683 = vld [vmem:[%s445 + $0x10] sm:$0xff]
        %v684 = vld [vmem:[%s445 + $0x18] sm:$0xff]
        %v685 = vld [vmem:[%s445 + $0x20] sm:$0xff]
        %v686 = vld [vmem:[%s445 + $0x28] sm:$0xff]
        %v687 = vld [vmem:[%s445 + $0x30] sm:$0xff]
        %v688 = vld [vmem:[%s445 + $0x38] sm:$0xff]
        %v689 = vld [vmem:[%s445 + $0x40] sm:$0xff]
        %v690 = vld [vmem:[%s445 + $0x48] sm:$0xff]
        %v691 = vld [vmem:[%s445 + $0x50] sm:$0xff]
        %v692 = vld [vmem:[%s445 + $0x58] sm:$0xff]
        %v693 = vld [vmem:[%s445 + $0x60] sm:$0xff]
        %v694 = vld [vmem:[%s445 + $0x68] sm:$0xff]
        %v695 = vld [vmem:[%s445 + $0x70] sm:$0xff]
        %v696 = vld [vmem:[%s445 + $0x78] sm:$0xff]
        %v697 = vpack.c.bf16 %v682, %v681
        %v698 = vpack.c.bf16 %v684, %v683
        %v699 = vpack.c.bf16 %v686, %v685
        %v700 = vpack.c.bf16 %v688, %v687
        %v701 = vpack.c.bf16 %v690, %v689
        %v702 = vpack.c.bf16 %v692, %v691
        %v703 = vpack.c.bf16 %v694, %v693
        %v704 = vpack.c.bf16 %v696, %v695
        %v705 = vld [vmem:[%s6] sm:$0xf]
        %v706 = vld [vmem:[%s6 + $0x4] sm:$0xf]
        %v707 = vld [vmem:[%s6 + $0x8] sm:$0xf]
        %v708 = vld [vmem:[%s6 + $0xc] sm:$0xf]
        %v713 = vunpack.c.l.b16 %v705
        %v714 = vunpack.c.l.b16 %v706
        %v715 = vunpack.c.l.b16 %v707
        %v716 = vunpack.c.l.b16 %v708
        %v717 = vpack.c.b16 %v714, %v713
        %v718 = vpack.c.b16 %v716, %v715
        %v722 = vsel %vm522, %v697, 0
        %v725 = vsel %vm522, %v698, 0
        %v728 = vsel %vm522, %v699, 0
        %v731 = vsel %vm522, %v700, 0
        %v734 = vsel %vm522, %v701, 0
        %v737 = vsel %vm522, %v702, 0
        %v740 = vsel %vm522, %v703, 0
        %v743 = vsel %vm522, %v704, 0
        %745 = vmatpush.bf16.msra.mxu0 0
        %746 = vmatpush.bf16.msra.mxu0 0
        %747 = vmatpush.bf16.msra.mxu0 0
        %748 = vmatpush.bf16.msra.mxu0 0
        %749 = vmatpush.bf16.msra.mxu0 0
        %750 = vmatpush.bf16.msra.mxu0 0
        %751 = vmatpush.bf16.msra.mxu0 %v718
        %752 = vmatpush.bf16.msra.mxu0 %v717
        %753 = vmatmul.bf16.gmra.mxu0 %v722
        %v754 = vpop.f32.mrf.mxu0
        %v755 = vadd.f32 0.0, %v754
        %v756 = vpop.f32.mrf.mxu0
        %v757 = vadd.f32 0.0, %v756
        %758 = vmatmul.bf16.gmra.mxu0 %v725
        %v759 = vpop.f32.mrf.mxu0
        %v760 = vadd.f32 0.0, %v759
        %v761 = vpop.f32.mrf.mxu0
        %v762 = vadd.f32 0.0, %v761
        %763 = vmatmul.bf16.gmra.mxu0 %v728
        %v764 = vpop.f32.mrf.mxu0
        %v765 = vadd.f32 0.0, %v764
        %v766 = vpop.f32.mrf.mxu0
        %v767 = vadd.f32 0.0, %v766
        %768 = vmatmul.bf16.gmra.mxu0 %v731
        %v769 = vpop.f32.mrf.mxu0
        %v770 = vadd.f32 0.0, %v769
        %v771 = vpop.f32.mrf.mxu0
        %v772 = vadd.f32 0.0, %v771
        %773 = vmatmul.bf16.gmra.mxu0 %v734
        %v774 = vpop.f32.mrf.mxu0
        %v775 = vadd.f32 0.0, %v774
        %v776 = vpop.f32.mrf.mxu0
        %v777 = vadd.f32 0.0, %v776
        %778 = vmatmul.bf16.gmra.mxu0 %v737
        %v779 = vpop.f32.mrf.mxu0
        %v780 = vadd.f32 0.0, %v779
        %v781 = vpop.f32.mrf.mxu0
        %v782 = vadd.f32 0.0, %v781
        %783 = vmatmul.bf16.gmra.mxu0 %v740
        %v784 = vpop.f32.mrf.mxu0
        %v785 = vadd.f32 0.0, %v784
        %v786 = vpop.f32.mrf.mxu0
        %v787 = vadd.f32 0.0, %v786
        %788 = vmatmul.bf16.gmra.mxu0 %v743
        %v789 = vpop.f32.mrf.mxu0
        %v790 = vadd.f32 0.0, %v789
        %v791 = vpop.f32.mrf.mxu0
        %v792 = vadd.f32 0.0, %v791
        %793 = vdwg.mxu0
        %v794 = vadd.f32 %v642, %v755
        %v795 = vadd.f32 %v644, %v757
        %v796 = vadd.f32 %v647, %v760
        %v797 = vadd.f32 %v649, %v762
        %v798 = vadd.f32 %v652, %v765
        %v799 = vadd.f32 %v654, %v767
        %v800 = vadd.f32 %v657, %v770
        %v801 = vadd.f32 %v659, %v772
        %v802 = vadd.f32 %v662, %v775
        %v803 = vadd.f32 %v664, %v777
        %v804 = vadd.f32 %v667, %v780
        %v805 = vadd.f32 %v669, %v782
        %v806 = vadd.f32 %v672, %v785
        %v807 = vadd.f32 %v674, %v787
        %v808 = vadd.f32 %v677, %v790
        %v809 = vadd.f32 %v679, %v792
        %v810 = vld [vmem:[%s451] sm:$0xff]
        %v811 = vld [vmem:[%s451 + $0x8] sm:$0xff]
        %v812 = vld [vmem:[%s451 + $0x10] sm:$0xff]
        %v813 = vld [vmem:[%s451 + $0x18] sm:$0xff]
        %v814 = vld [vmem:[%s451 + $0x20] sm:$0xff]
        %v815 = vld [vmem:[%s451 + $0x28] sm:$0xff]
        %v816 = vld [vmem:[%s451 + $0x30] sm:$0xff]
        %v817 = vld [vmem:[%s451 + $0x38] sm:$0xff]
        %v818 = vld [vmem:[%s451 + $0x40] sm:$0xff]
        %v819 = vld [vmem:[%s451 + $0x48] sm:$0xff]
        %v820 = vld [vmem:[%s451 + $0x50] sm:$0xff]
        %v821 = vld [vmem:[%s451 + $0x58] sm:$0xff]
        %v822 = vld [vmem:[%s451 + $0x60] sm:$0xff]
        %v823 = vld [vmem:[%s451 + $0x68] sm:$0xff]
        %v824 = vld [vmem:[%s451 + $0x70] sm:$0xff]
        %v825 = vld [vmem:[%s451 + $0x78] sm:$0xff]
        %v826 = vpack.c.bf16 %v811, %v810
        %v827 = vpack.c.bf16 %v813, %v812
        %v828 = vpack.c.bf16 %v815, %v814
        %v829 = vpack.c.bf16 %v817, %v816
        %v830 = vpack.c.bf16 %v819, %v818
        %v831 = vpack.c.bf16 %v821, %v820
        %v832 = vpack.c.bf16 %v823, %v822
        %v833 = vpack.c.bf16 %v825, %v824
        %v834 = vld [vmem:[%s7] sm:$0xf]
        %v835 = vld [vmem:[%s7 + $0x4] sm:$0xf]
        %v836 = vld [vmem:[%s7 + $0x8] sm:$0xf]
        %v837 = vld [vmem:[%s7 + $0xc] sm:$0xf]
        %v842 = vunpack.c.l.b16 %v834
        %v843 = vunpack.c.l.b16 %v835
        %v844 = vunpack.c.l.b16 %v836
        %v845 = vunpack.c.l.b16 %v837
        %v846 = vpack.c.b16 %v843, %v842
        %v847 = vpack.c.b16 %v845, %v844
        %v851 = vsel %vm522, %v826, 0
        %v854 = vsel %vm522, %v827, 0
        %v857 = vsel %vm522, %v828, 0
        %v860 = vsel %vm522, %v829, 0
        %v863 = vsel %vm522, %v830, 0
        %v866 = vsel %vm522, %v831, 0
        %v869 = vsel %vm522, %v832, 0
        %v872 = vsel %vm522, %v833, 0
        %874 = vmatpush.bf16.msra.mxu0 0
        %875 = vmatpush.bf16.msra.mxu0 0
        %876 = vmatpush.bf16.msra.mxu0 0
        %877 = vmatpush.bf16.msra.mxu0 0
        %878 = vmatpush.bf16.msra.mxu0 0
        %879 = vmatpush.bf16.msra.mxu0 0
        %880 = vmatpush.bf16.msra.mxu0 %v847
        %881 = vmatpush.bf16.msra.mxu0 %v846
        %882 = vmatmul.bf16.gmra.mxu0 %v851
        %v883 = vpop.f32.mrf.mxu0
        %v884 = vadd.f32 0.0, %v883
        %v885 = vpop.f32.mrf.mxu0
        %v886 = vadd.f32 0.0, %v885
        %887 = vmatmul.bf16.gmra.mxu0 %v854
        %v888 = vpop.f32.mrf.mxu0
        %v889 = vadd.f32 0.0, %v888
        %v890 = vpop.f32.mrf.mxu0
        %v891 = vadd.f32 0.0, %v890
        %892 = vmatmul.bf16.gmra.mxu0 %v857
        %v893 = vpop.f32.mrf.mxu0
        %v894 = vadd.f32 0.0, %v893
        %v895 = vpop.f32.mrf.mxu0
        %v896 = vadd.f32 0.0, %v895
        %897 = vmatmul.bf16.gmra.mxu0 %v860
        %v898 = vpop.f32.mrf.mxu0
        %v899 = vadd.f32 0.0, %v898
        %v900 = vpop.f32.mrf.mxu0
        %v901 = vadd.f32 0.0, %v900
        %902 = vmatmul.bf16.gmra.mxu0 %v863
        %v903 = vpop.f32.mrf.mxu0
        %v904 = vadd.f32 0.0, %v903
        %v905 = vpop.f32.mrf.mxu0
        %v906 = vadd.f32 0.0, %v905
        %907 = vmatmul.bf16.gmra.mxu0 %v866
        %v908 = vpop.f32.mrf.mxu0
        %v909 = vadd.f32 0.0, %v908
        %v910 = vpop.f32.mrf.mxu0
        %v911 = vadd.f32 0.0, %v910
        %912 = vmatmul.bf16.gmra.mxu0 %v869
        %v913 = vpop.f32.mrf.mxu0
        %v914 = vadd.f32 0.0, %v913
        %v915 = vpop.f32.mrf.mxu0
        %v916 = vadd.f32 0.0, %v915
        %917 = vmatmul.bf16.gmra.mxu0 %v872
        %v918 = vpop.f32.mrf.mxu0
        %v919 = vadd.f32 0.0, %v918
        %v920 = vpop.f32.mrf.mxu0
        %v921 = vadd.f32 0.0, %v920
        %922 = vdwg.mxu0
        %v923 = vadd.f32 %v794, %v884
        %v924 = vadd.f32 %v795, %v886
        %v925 = vadd.f32 %v796, %v889
        %v926 = vadd.f32 %v797, %v891
        %v927 = vadd.f32 %v798, %v894
        %v928 = vadd.f32 %v799, %v896
        %v929 = vadd.f32 %v800, %v899
        %v930 = vadd.f32 %v801, %v901
        %v931 = vadd.f32 %v802, %v904
        %v932 = vadd.f32 %v803, %v906
        %v933 = vadd.f32 %v804, %v909
        %v934 = vadd.f32 %v805, %v911
        %v935 = vadd.f32 %v806, %v914
        %v936 = vadd.f32 %v807, %v916
        %v937 = vadd.f32 %v808, %v919
        %v938 = vadd.f32 %v809, %v921
        %v939 = vld [vmem:[%s8] sm:$0x1]
        %v941 = vperm.slane %v939, 0
        %v943 = vadd.f32 %v923, %v941
        %v944 = vadd.f32 %v924, %v941
        %v945 = vadd.f32 %v925, %v941
        %v946 = vadd.f32 %v926, %v941
        %v947 = vadd.f32 %v927, %v941
        %v948 = vadd.f32 %v928, %v941
        %v949 = vadd.f32 %v929, %v941
        %v950 = vadd.f32 %v930, %v941
        %v951 = vadd.f32 %v931, %v941
        %v952 = vadd.f32 %v932, %v941
        %v953 = vadd.f32 %v933, %v941
        %v954 = vadd.f32 %v934, %v941
        %v955 = vadd.f32 %v935, %v941
        %v956 = vadd.f32 %v936, %v941
        %v957 = vadd.f32 %v937, %v941
        %v958 = vadd.f32 %v938, %v941
        %v959 = vmax.f32 %v943, 0.0
        %v960 = vmax.f32 %v944, 0.0
        %v961 = vmax.f32 %v945, 0.0
        %v962 = vmax.f32 %v946, 0.0
        %v963 = vmax.f32 %v947, 0.0
        %v964 = vmax.f32 %v948, 0.0
        %v965 = vmax.f32 %v949, 0.0
        %v966 = vmax.f32 %v950, 0.0
        %v967 = vmax.f32 %v951, 0.0
        %v968 = vmax.f32 %v952, 0.0
        %v969 = vmax.f32 %v953, 0.0
        %v970 = vmax.f32 %v954, 0.0
        %v971 = vmax.f32 %v955, 0.0
        %v972 = vmax.f32 %v956, 0.0
        %v973 = vmax.f32 %v957, 0.0
        %v974 = vmax.f32 %v958, 0.0
        %v975 = vld [vmem:[%s9] sm:$0x1]
        %v976 = vpack.c.bf16 %v960, %v959
        %v977 = vpack.c.bf16 %v962, %v961
        %v978 = vpack.c.bf16 %v964, %v963
        %v979 = vpack.c.bf16 %v966, %v965
        %v980 = vpack.c.bf16 %v968, %v967
        %v981 = vpack.c.bf16 %v970, %v969
        %v982 = vpack.c.bf16 %v972, %v971
        %v983 = vpack.c.bf16 %v974, %v973
        %s984 = sld [smem:[#allocation2]]
        %v985 = vstv %s984
        %986 = vmatpush.bf16.xpose.msra.mxu0 %v983
        %987 = vmatpush.bf16.xpose.msra.mxu0 %v982
        %988 = vmatpush.bf16.xpose.msra.mxu0 %v981
        %989 = vmatpush.bf16.xpose.msra.mxu0 %v980
        %990 = vmatpush.bf16.xpose.msra.mxu0 %v979
        %991 = vmatpush.bf16.xpose.msra.mxu0 %v978
        %992 = vmatpush.bf16.xpose.msra.mxu0 %v977
        %993 = vmatpush.bf16.xpose.msra.mxu0 %v976
        %994 = vmatmul.bf16.gmra.mxu0 %v975
        %v995 = vpop.f32.mrf.mxu0
        %v996 = vadd.f32 %v985, %v995
        %v997 = vpop.f32.mrf.mxu0
        %998 = vdwg.mxu0
        %999 = vst [vmem:[%s428] sm:$0x1] %v996
        %s1000 = sand.u32 %s285, 1
        %s1001 = scalar_lea.sflag [#allocation4], %s1000
        %s1002 = sand.u32 %s285, 1
        %s1003 = scalar_lea.vmem [#allocation3], %s1002
        // Predicated region
        $region65: #{tpu_custom_call.1} parent=63 // pred_check
          %p1004 = pneg %p295
        $region66: #{tpu_custom_call.1} parent=63 // pred_check_branch
          %1006 = sbr.rel (%p1004) target = $region68
        $region67: #{tpu_custom_call.1} parent=63 // pred_region
          %1008 = vsyncadd %s1001, 0
          %s1009 = scalar_lea.hbm %s11, %s26
          %s1011 = sshll.u32 %s1003, 4
          %s1012 = int_to_ptr.vmem [resolvable:$true] %s1011
          %s1013 = sshll.u32 %s1009, 4
          %s1014 = int_to_ptr.hbm [resolvable:$true] %s1013
          %1016 = dma.vmem_to_hbm [thread:$0]  %s1012, 16, %s1014, %s1001
        $region68: #{tpu_custom_call.1} parent=63 // pred_fallthru
          _
      $region64: #{tpu_custom_call.1} parent=5 // pred_fallthru
        _
      %p1017 = scmp.le.s32.totalorder 2, %s21
      // Predicated region
      $region69: #{tpu_custom_call.1} parent=5 // pred_check
        %p1018 = pneg %p1017
      $region70: #{tpu_custom_call.1} parent=5 // pred_check_branch
        %1020 = sbr.rel (%p1018) target = $region72
      $region71: #{tpu_custom_call.1} parent=5 // pred_region
        %s1021 = ssub.s32 %s21, 2
        // Predicated region
        $region73: #{tpu_custom_call.1} parent=71 // pred_check
          %p1022 = pneg %p301
        $region74: #{tpu_custom_call.1} parent=71 // pred_check_branch
          %1024 = sbr.rel (%p1022) target = $region76
        $region75: #{tpu_custom_call.1} parent=71 // pred_region
          %s1025 = sand.u32 %s286, 1
          %s1026 = scalar_lea.sflag [#allocation4], %s1025
          %s1027 = sand.u32 %s286, 1
          %s1028 = scalar_lea.vmem [#allocation3], %s1027
          %1030 = dma.done %s1026, 16
        $region76: #{tpu_custom_call.1} parent=71 // pred_fallthru
          _
      $region72: #{tpu_custom_call.1} parent=5 // pred_fallthru
        _
    $region6: #{tpu_custom_call.1} parent=1 // loop_footer
      %s25 = sadd.s32 1, %s21
    $region7: #{tpu_custom_call.1} parent=1 // loop_footer_branch
      %20 = sbr.rel target = $region3
    $region8: #{tpu_custom_call.1} parent=1 // loop_exit
      _
    %1031 = vsyncpa [#allocation4], 1
    %s1032 = scalar_lea.sflag [#allocation4], 1
    %1033 = vsyncpa %s1032, 1

</llo_original>
